<compile_context>
chip_gen: v6e
topology: v6e:2x2x1
jax: 0.10.0
libtpu: 0.0.40
codegen_flags: <defaults>
</compile_context>

<pallas_src>
import functools

import jax
import jax.numpy as jnp
from jax.experimental import pallas as pl
from jax.experimental.pallas import tpu as pltpu


def _round_up(x, m):
    return (x + m - 1) // m * m


def _contrastive_loss_kernel(x0_ref, x1_ref, y_ref, o_ref, *,
                             margin, weight, batch, block_rows):
    # Native-dtype load, f32 compute.
    x0 = x0_ref[...].astype(jnp.float32)            # (TB, D)
    x1 = x1_ref[...].astype(jnp.float32)            # (TB, D)
    labels = y_ref[...]                             # (TB, 2) int32: [:,0]=y0, [:,1]=y1
    y0 = labels[:, 0:1]                             # (TB, 1)
    y1 = labels[:, 1:2]                             # (TB, 1)

    # dist = sqrt(sum((x0 - x1)^2, axis=1)); dist_sq == sum of squares.
    diff = x0 - x1
    dist_sq = jnp.sum(diff * diff, axis=1, keepdims=True)    # (TB, 1)  XLU reduce
    dist = jnp.sqrt(dist_sq)                                  # EUP

    # y = 1 * (y0 == y1)
    y = (y0 == y1).astype(jnp.float32)

    # weight = (w - 1) * (y0 == 1 & y1 == 1) + 1
    both_pos = jnp.logical_and(y0 == 1, y1 == 1).astype(jnp.float32)
    w = (weight - 1.0) * both_pos + 1.0

    # clamp(margin - dist, min=0)
    clamped = jnp.maximum(margin - dist, 0.0)

    # loss = (y * dist_sq + (1 - y) * clamp^2) * weight
    loss = (y * dist_sq + (1.0 - y) * clamped * clamped) * w  # (TB, 1)

    # Mask rows past the true batch size (ragged last tile).  Must be a select
    # (jnp.where), not a multiply: out-of-bounds tile contents are unspecified
    # and NaN * 0 would propagate.
    row = (pl.program_id(0) * block_rows
           + jax.lax.broadcasted_iota(jnp.int32, loss.shape, 0))
    loss = jnp.where(row < batch, loss, 0.0)

    # Per-block partial sum; the /(2*B) finalize runs once in the wrapper.
    partial = jnp.sum(loss)
    o_ref[...] = jnp.full(o_ref.shape, partial, dtype=o_ref.dtype)


def _vmem_capacity_bytes():
    try:
        return int(pltpu.get_tpu_info().vmem_capacity_bytes)
    except Exception:
        return 64 * 1024 * 1024  # conservative (v7x-sized) fallback


def _pick_tiling(b, d, itemsize, block_rows):
    """Returns (tb, vmem_limit_bytes), generation-aware."""
    vmem_cap = _vmem_capacity_bytes()
    if vmem_cap >= 100 * 1024 * 1024:        # v5e / v6e: 128 MiB VMEM per core
        target_feat_tile = 12 * 1024 * 1024  # ~12 MiB per feature tile
        vmem_ceiling = 96 * 1024 * 1024
    else:                                    # v7x: 64 MiB VMEM per core
        target_feat_tile = 6 * 1024 * 1024
        vmem_ceiling = 48 * 1024 * 1024

    if block_rows is not None:
        tb = max(8, _round_up(int(block_rows), 8))
    else:
        tb = max(8, target_feat_tile // max(1, d * itemsize))
        if tb >= 128:
            tb = (tb // 128) * 128           # lane-friendly multiple of 128
        else:
            tb = (tb // 8) * 8
    tb = min(tb, _round_up(b, 8))

    # Guarantee >= 2 grid blocks when possible so the "parallel" grid axis
    # actually uses both v7x TensorCores (harmless on v5e/v6e).
    if block_rows is None and b > 8 and pl.cdiv(b, tb) < 2:
        tb = max(8, _round_up(pl.cdiv(b, 2), 8))

    # Real double-buffered VMEM footprint, including the lane-padded label
    # tile: (tb, 2) int32 occupies (round_up(tb,8), 128) words in VMEM.
    feat_tile_bytes = tb * d * itemsize
    label_tile_bytes = _round_up(tb, 8) * 128 * 4
    need = 2 * (2 * feat_tile_bytes + label_tile_bytes) + 2 * 1024 * 1024

    # If we somehow overshot the ceiling, shrink rows proportionally.
    while need > vmem_ceiling and tb > 8:
        tb = max(8, (tb // 2 // 8) * 8)
        feat_tile_bytes = tb * d * itemsize
        label_tile_bytes = _round_up(tb, 8) * 128 * 4
        need = 2 * (2 * feat_tile_bytes + label_tile_bytes) + 2 * 1024 * 1024

    vmem_limit = int(min(vmem_ceiling, max(need, 32 * 1024 * 1024)))
    return tb, vmem_limit


def contrastive_loss(x0, x1, y0, y1, *, margin=1.0, weight=1.0, block_rows=None):
    """Pallas implementation of ContrastiveLoss(margin, weight, 'mean')."""
    assert x0.shape == x1.shape and x0.ndim == 2
    b, d = x0.shape

    y0 = jnp.asarray(y0).reshape(b).astype(jnp.int32)
    y1 = jnp.asarray(y1).reshape(b).astype(jnp.int32)
    y01 = jnp.stack([y0, y1], axis=1)               # (B, 2) int32, single operand

    itemsize = jnp.dtype(x0.dtype).itemsize
    tb, vmem_limit = _pick_tiling(b, d, itemsize, block_rows)
    num_blocks = pl.cdiv(b, tb)                      # ragged last tile is masked

    kernel = functools.partial(
        _contrastive_loss_kernel,
        margin=float(margin), weight=float(weight), batch=b, block_rows=tb)

    out = pl.pallas_call(
        kernel,
        out_shape=jax.ShapeDtypeStruct((1, num_blocks * 128), jnp.float32),
        grid_spec=pltpu.PrefetchScalarGridSpec(
            num_scalar_prefetch=0,
            grid=(num_blocks,),
            in_specs=[
                pl.BlockSpec((tb, d), lambda i: (i, 0)),   # x0 (native dtype)
                pl.BlockSpec((tb, d), lambda i: (i, 0)),   # x1 (native dtype)
                pl.BlockSpec((tb, 2), lambda i: (i, 0)),   # packed labels
            ],
            out_specs=pl.BlockSpec((1, 128), lambda i: (0, i)),  # partial sums
        ),
        compiler_params=pltpu.CompilerParams(
            dimension_semantics=("parallel",),       # shard blocks across TCs
            vmem_limit_bytes=vmem_limit,
        ),
    )(x0, x1, y01)

    # Each block broadcast its partial across 128 lanes; take lane 0 per block.
    partials = out[0].reshape(num_blocks, 128)[:, 0]
    return jnp.sum(partials) / (2.0 * b)


def _reference(x0, x1, y0, y1, margin=1.0, weight=1.0):
    """Pure-JAX reference mirroring the PyTorch forward (reduction='mean')."""
    y = (y0 == y1).astype(jnp.float32)
    w = (weight - 1.0) * jnp.logical_and(y0 == 1, y1 == 1).astype(jnp.float32) + 1.0
    dist = jnp.sqrt(jnp.sum((x0 - x1) ** 2, axis=1))
    dist_sq = dist ** 2
    clamped = jnp.maximum(margin - dist, 0.0)
    loss = y * dist_sq + (1.0 - y) * clamped ** 2
    return jnp.sum(loss * w) / 2.0 / x0.shape[0]


if __name__ == "__main__":
    key = jax.random.PRNGKey(0)
    k0, k1, k2, k3 = jax.random.split(key, 4)

    B, D = 20, 128
    x0 = jax.random.normal(k0, (B, D), dtype=jnp.float32) * 0.5
    x1 = jax.random.normal(k1, (B, D), dtype=jnp.float32) * 0.5
    y0 = jax.random.randint(k2, (B,), 0, 2, dtype=jnp.int32)
    y1 = jax.random.randint(k3, (B,), 0, 2, dtype=jnp.int32)

    margin, weight = 1.0, 2.0
    ref = _reference(x0, x1, y0, y1, margin=margin, weight=weight)

    # Multi-block path: exercises the grid, in-kernel ragged-tile masking
    # (20 rows -> 3 blocks of 8, last block has 4 masked rows) and the
    # per-block partial-sum reduction.
    loss_tiled = contrastive_loss(x0, x1, y0, y1, margin=margin, weight=weight,
                                  block_rows=8)
    loss_tiled = jax.block_until_ready(loss_tiled)
    assert jnp.allclose(loss_tiled, ref, rtol=1e-5, atol=1e-5), (loss_tiled, ref)

    # Auto-tiled path (>=2 blocks forced, ragged last tile masked in-kernel).
    loss_auto = contrastive_loss(x0, x1, y0, y1, margin=margin, weight=weight)
    loss_auto = jax.block_until_ready(loss_auto)
    assert jnp.allclose(loss_auto, ref, rtol=1e-5, atol=1e-5), (loss_auto, ref)

    print("KERNEL_OK")
</pallas_src>

<mosaic_0001>
module attributes {stable_mosaic.version = 11 : i64} {
  func.func @_contrastive_loss_kernel(%arg0: i32, %arg1: memref<8x128xf32, #tpu.memory_space<vmem>>, %arg2: memref<8x128xf32, #tpu.memory_space<vmem>>, %arg3: memref<8x2xi32, #tpu.memory_space<vmem>>, %arg4: memref<1x128xf32, #tpu.memory_space<vmem>>) attributes {dimension_semantics = [#tpu.dimension_semantics<parallel>], iteration_bounds = array<i64: 3>, scalar_prefetch = 0 : i64, scratch_operands = 0 : i64, tpu.core_type = #tpu.core_type<tc>, window_params = [{transform_indices = @transform_0, window_bounds = array<i64: 8, 128>}, {transform_indices = @transform_1, window_bounds = array<i64: 8, 128>}, {transform_indices = @transform_2, window_bounds = array<i64: 8, 2>}, {transform_indices = @transform_3, window_bounds = array<i64: 1, 128>}]} {
    %c0 = arith.constant 0 : index
    %c0_0 = arith.constant 0 : index
    %0 = vector.load %arg1[%c0, %c0_0] : memref<8x128xf32, #tpu.memory_space<vmem>>, vector<8x128xf32>
    %c0_1 = arith.constant 0 : index
    %c0_2 = arith.constant 0 : index
    %1 = vector.load %arg2[%c0_1, %c0_2] : memref<8x128xf32, #tpu.memory_space<vmem>>, vector<8x128xf32>
    %c0_3 = arith.constant 0 : index
    %c0_4 = arith.constant 0 : index
    %2 = vector.load %arg3[%c0_3, %c0_4] : memref<8x2xi32, #tpu.memory_space<vmem>>, vector<8x2xi32>
    %3 = vector.extract_strided_slice %2 {offsets = [0, 0], sizes = [8, 1], strides = [1, 1]} : vector<8x2xi32> to vector<8x1xi32>
    %4 = vector.extract_strided_slice %2 {offsets = [0, 1], sizes = [8, 1], strides = [1, 1]} : vector<8x2xi32> to vector<8x1xi32>
    %5 = arith.subf %0, %1 : vector<8x128xf32>
    %6 = arith.mulf %5, %5 : vector<8x128xf32>
    %cst = arith.constant dense<0.000000e+00> : vector<8xf32>
    %7 = vector.multi_reduction <add>, %6, %cst [1] : vector<8x128xf32> to vector<8xf32>
    %8 = vector.shape_cast %7 : vector<8xf32> to vector<8x1xf32>
    %9 = math.sqrt %8 : vector<8x1xf32>
    %10 = arith.cmpi eq, %3, %4 : vector<8x1xi32>
    %11 = arith.extui %10 : vector<8x1xi1> to vector<8x1xi32>
    %12 = arith.sitofp %11 : vector<8x1xi32> to vector<8x1xf32>
    %c1_i32 = arith.constant 1 : i32
    %13 = vector.broadcast %c1_i32 : i32 to vector<8x1xi32>
    %14 = arith.cmpi eq, %3, %13 : vector<8x1xi32>
    %c1_i32_5 = arith.constant 1 : i32
    %15 = vector.broadcast %c1_i32_5 : i32 to vector<8x1xi32>
    %16 = arith.cmpi eq, %4, %15 : vector<8x1xi32>
    %17 = arith.andi %14, %16 : vector<8x1xi1>
    %18 = arith.extui %17 : vector<8x1xi1> to vector<8x1xi32>
    %19 = arith.sitofp %18 : vector<8x1xi32> to vector<8x1xf32>
    %cst_6 = arith.constant 1.000000e+00 : f32
    %20 = vector.broadcast %cst_6 : f32 to vector<8x1xf32>
    %21 = arith.mulf %20, %19 : vector<8x1xf32>
    %cst_7 = arith.constant 1.000000e+00 : f32
    %22 = vector.broadcast %cst_7 : f32 to vector<8x1xf32>
    %23 = arith.addf %21, %22 : vector<8x1xf32>
    %cst_8 = arith.constant 1.000000e+00 : f32
    %24 = vector.broadcast %cst_8 : f32 to vector<8x1xf32>
    %25 = arith.subf %24, %9 : vector<8x1xf32>
    %cst_9 = arith.constant 0.000000e+00 : f32
    %26 = vector.broadcast %cst_9 : f32 to vector<8x1xf32>
    %27 = arith.maximumf %25, %26 : vector<8x1xf32>
    %28 = arith.mulf %12, %8 : vector<8x1xf32>
    %cst_10 = arith.constant 1.000000e+00 : f32
    %29 = vector.broadcast %cst_10 : f32 to vector<8x1xf32>
    %30 = arith.subf %29, %12 : vector<8x1xf32>
    %31 = arith.mulf %30, %27 : vector<8x1xf32>
    %32 = arith.mulf %31, %27 : vector<8x1xf32>
    %33 = arith.addf %28, %32 : vector<8x1xf32>
    %34 = arith.mulf %33, %23 : vector<8x1xf32>
    %c8_i32 = arith.constant 8 : i32
    %35 = arith.muli %arg0, %c8_i32 : i32
    %36 = tpu.iota {dimensions = array<i32: 0>} : vector<8x1xi32>
    %37 = vector.broadcast %35 : i32 to vector<8x1xi32>
    %38 = arith.addi %37, %36 : vector<8x1xi32>
    %c20_i32 = arith.constant 20 : i32
    %39 = vector.broadcast %c20_i32 : i32 to vector<8x1xi32>
    %40 = arith.cmpi slt, %38, %39 : vector<8x1xi32>
    %cst_11 = arith.constant 0.000000e+00 : f32
    %41 = vector.broadcast %cst_11 : f32 to vector<8x1xf32>
    %42 = arith.select %40, %34, %41 : vector<8x1xi1>, vector<8x1xf32>
    %43 = vector.shape_cast %42 : vector<8x1xf32> to vector<1x8x1xf32>
    %cst_12 = arith.constant dense<0.000000e+00> : vector<1xf32>
    %44 = vector.multi_reduction <add>, %43, %cst_12 [1, 2] : vector<1x8x1xf32> to vector<1xf32>
    %45 = vector.shape_cast %44 : vector<1xf32> to vector<1x1x1xf32>
    %46 = vector.extract %45[0, 0, 0] : f32 from vector<1x1x1xf32>
    %47 = vector.broadcast %46 : f32 to vector<1x128xf32>
    %c0_13 = arith.constant 0 : index
    %c0_14 = arith.constant 0 : index
    %48 = vector.load %arg4[%c0_13, %c0_14] : memref<1x128xf32, #tpu.memory_space<vmem>>, vector<1x128xf32>
    tpu.vector_store %arg4[%c0_13, %c0_14], %47 {strides = array<i32>} : memref<1x128xf32, #tpu.memory_space<vmem>>, vector<1x128xf32>,
    return
  }
  func.func @transform_0(%arg0: i32) -> (i32, i32) {
    %c0_i32 = arith.constant 0 : i32
    %c0_i32_0 = arith.constant 0 : i32
    return %arg0, %c0_i32 : i32, i32
  }
  func.func @transform_1(%arg0: i32) -> (i32, i32) {
    %c0_i32 = arith.constant 0 : i32
    %c0_i32_0 = arith.constant 0 : i32
    return %arg0, %c0_i32 : i32, i32
  }
  func.func @transform_2(%arg0: i32) -> (i32, i32) {
    %c0_i32 = arith.constant 0 : i32
    %c0_i32_0 = arith.constant 0 : i32
    return %arg0, %c0_i32 : i32, i32
  }
  func.func @transform_3(%arg0: i32) -> (i32, i32) {
    %c0_i32 = arith.constant 0 : i32
    %c0_i32_0 = arith.constant 0 : i32
    return %c0_i32, %arg0 : i32, i32
  }
}

</mosaic_0001>

<llo_original>
// kernel: tpu_custom_call.1
$region0: #{tpu_custom_call.1}
  #allocation0 [shape = 'u32[]', space=smem, size = 0x4, offset = 0x4, fixed_abs, tag = 'smem constant byte address 0x4 - core index']
  #allocation1 [shape = 'u32[144,128]{1,0:T(1,128)}', space=vmem, size = 0x12000, scoped, tag = 'internal scratch']
  %s0 = inlined_call_operand.vmem [shape: f32[20,128], index: 0, kind: input, shape index: {}]
  %s1 = inlined_call_operand.hbm [shape: f32[20,128], index: 1, kind: input, shape index: {}]
  %s2 = inlined_call_operand.vmem [shape: s32[20,2], index: 2, kind: input, shape index: {}]
  %s3 = inlined_call_operand.hbm [shape: f32[1,384], index: 3, kind: output, shape index: {}]
  %s4 = sld [smem:[#allocation0]]
  $region49: #{tpu_custom_call.1} parent=0
    _
  %s6 = ssub.s32 1, %s4
  %s7 = scalar_select 0, %s6, %s4
  $region1: #{tpu_custom_call.1} parent=0
    #allocation2 [shape = 'u8[8192]{0}', space=vmem, size = 0x2000, scoped, tag = 'input window, operand 1']
    #allocation3 [shape = 's32[2]{0}', space=sflag, size = 0x8, scoped, tag = 'scoped memory for tpu_custom_call.1']
    #allocation4 [shape = 's32[2]{0}', space=sflag, size = 0x8, scoped, tag = 'scoped memory for tpu_custom_call.1']
    #allocation5 [shape = 'u8[1024]{0}', space=vmem, size = 0x400, scoped, tag = 'output window, operand 0']
    %8 = vsyncpa [#allocation3], 0
    %s9 = scalar_lea.sflag [#allocation3], 1
    %10 = vsyncpa %s9, 0
    %11 = vsyncpa [#allocation4], 0
    %s12 = scalar_lea.sflag [#allocation4], 1
    %13 = vsyncpa %s12, 0
    loop: start=0, step=1, limit=5
    $region2: #{tpu_custom_call.1} parent=1 // loop_pre_header
      _
    $region3: #{tpu_custom_call.1} parent=1 // loop_header
      %s15 = sphi 0, %s19
      %p16 = scmp.ge.s32.totalorder %s15, 5
      %s25 = sphi 0, %s27
      %s28 = sphi 0, %s25
      %s29 = sphi 0, %s28
      %s45 = sphi 0, %s29
      %s51 = sphi 0, %s53
      %s54 = sphi 0, %s51
      %s55 = sphi 0, %s54
      %s71 = sphi 0, %s55
      %s77 = sphi 0, %s79
      %s80 = sphi 0, %s77
      %s81 = sphi 0, %s80
      %s97 = sphi 0, %s81
      %s103 = sphi 0, %s105
      %s106 = sphi 0, %s103
      %s107 = sphi 0, %s106
      %s123 = sphi 0, %s107
    $region4: #{tpu_custom_call.1} parent=1 // loop_header_branch
      %18 = sbr.rel (%p16) target = $region8
    $region5: #{tpu_custom_call.1} parent=1 // loop_body
      %s20 = ssub.s32 %s15, 1
      %s21 = ssub.s32 %s15, 2
      %s22 = sadd.s32 %s15, 1
      %s23 = ssub.s32 %s15, %s22
      %p24 = scmp.eq.s32.totalorder %s23, 0
      %s26 = sadd.s32 %s25, 1
      %s27 = scalar_select %p24, %s25, %s26
      %p30 = pneg %p24
      %p31 = scmp.eq.s32.totalorder %s15, 2
      %p32 = por %p30, %p31
      %p33 = scmp.ne.s32.totalorder %s25, %s28
      %p34 = scmp.eq.s32.totalorder %s15, 0
      %p35 = por %p33, %p34
      %p36 = scmp.ne.s32.totalorder %s25, %s28
      %p37 = scmp.eq.s32.totalorder %s20, 2
      %p38 = por %p36, %p37
      %p39 = scmp.ne.s32.totalorder %s28, %s29
      %p40 = scmp.eq.s32.totalorder %s20, 0
      %p41 = por %p39, %p40
      %p42 = scmp.ne.s32.totalorder %s28, %s29
      %p43 = scmp.eq.s32.totalorder %s21, 2
      %p44 = por %p42, %p43
      %p46 = scmp.ne.s32.totalorder %s29, %s45
      %p47 = scmp.eq.s32.totalorder %s21, 0
      %p48 = por %p46, %p47
      %s49 = ssub.s32 %s15, %s22
      %p50 = scmp.eq.s32.totalorder %s49, 0
      %s52 = sadd.s32 %s51, 1
      %s53 = scalar_select %p50, %s51, %s52
      %p56 = pneg %p50
      %p57 = scmp.eq.s32.totalorder %s15, 2
      %p58 = por %p56, %p57
      %p59 = scmp.ne.s32.totalorder %s51, %s54
      %p60 = scmp.eq.s32.totalorder %s15, 0
      %p61 = por %p59, %p60
      %p62 = scmp.ne.s32.totalorder %s51, %s54
      %p63 = scmp.eq.s32.totalorder %s20, 2
      %p64 = por %p62, %p63
      %p65 = scmp.ne.s32.totalorder %s54, %s55
      %p66 = scmp.eq.s32.totalorder %s20, 0
      %p67 = por %p65, %p66
      %p68 = scmp.ne.s32.totalorder %s54, %s55
      %p69 = scmp.eq.s32.totalorder %s21, 2
      %p70 = por %p68, %p69
      %p72 = scmp.ne.s32.totalorder %s55, %s71
      %p73 = scmp.eq.s32.totalorder %s21, 0
      %p74 = por %p72, %p73
      %s75 = ssub.s32 %s15, %s22
      %p76 = scmp.eq.s32.totalorder %s75, 0
      %s78 = sadd.s32 %s77, 1
      %s79 = scalar_select %p76, %s77, %s78
      %p82 = pneg %p76
      %p83 = scmp.eq.s32.totalorder %s15, 2
      %p84 = por %p82, %p83
      %p85 = scmp.ne.s32.totalorder %s77, %s80
      %p86 = scmp.eq.s32.totalorder %s15, 0
      %p87 = por %p85, %p86
      %p88 = scmp.ne.s32.totalorder %s77, %s80
      %p89 = scmp.eq.s32.totalorder %s20, 2
      %p90 = por %p88, %p89
      %p91 = scmp.ne.s32.totalorder %s80, %s81
      %p92 = scmp.eq.s32.totalorder %s20, 0
      %p93 = por %p91, %p92
      %p94 = scmp.ne.s32.totalorder %s80, %s81
      %p95 = scmp.eq.s32.totalorder %s21, 2
      %p96 = por %p94, %p95
      %p98 = scmp.ne.s32.totalorder %s81, %s97
      %p99 = scmp.eq.s32.totalorder %s21, 0
      %p100 = por %p98, %p99
      %s101 = ssub.s32 %s15, %s22
      %p102 = scmp.eq.s32.totalorder %s101, 0
      %s104 = sadd.s32 %s103, 1
      %s105 = scalar_select %p102, %s103, %s104
      %p108 = pneg %p102
      %p109 = scmp.eq.s32.totalorder %s15, 2
      %p110 = por %p108, %p109
      %p111 = scmp.ne.s32.totalorder %s103, %s106
      %p112 = scmp.eq.s32.totalorder %s15, 0
      %p113 = por %p111, %p112
      %p114 = scmp.ne.s32.totalorder %s103, %s106
      %p115 = scmp.eq.s32.totalorder %s20, 2
      %p116 = por %p114, %p115
      %p117 = scmp.ne.s32.totalorder %s106, %s107
      %p118 = scmp.eq.s32.totalorder %s20, 0
      %p119 = por %p117, %p118
      %p120 = scmp.ne.s32.totalorder %s106, %s107
      %p121 = scmp.eq.s32.totalorder %s21, 2
      %p122 = por %p120, %p121
      %p124 = scmp.ne.s32.totalorder %s107, %s123
      %p125 = scmp.eq.s32.totalorder %s21, 0
      %p126 = por %p124, %p125
      %p127 = scmp.le.s32.totalorder 1, %s15
      %p128 = scmp.lt.s32.totalorder %s15, 4
      %p129 = pnand %p127, %p128
      %p130 = pneg %p129
      // Predicated region
      $region9: #{tpu_custom_call.1} parent=5 // pred_check
        _
      $region10: #{tpu_custom_call.1} parent=5 // pred_check_branch
        %132 = sbr.rel (%p129) target = $region12
      $region11: #{tpu_custom_call.1} parent=5 // pred_region
        %s133 = ssub.s32 %s15, 1
      $region12: #{tpu_custom_call.1} parent=5 // pred_fallthru
        _
      %p134 = scmp.lt.s32.totalorder %s15, 3
      // Predicated region
      $region13: #{tpu_custom_call.1} parent=5 // pred_check
        %p135 = pneg %p134
      $region14: #{tpu_custom_call.1} parent=5 // pred_check_branch
        %137 = sbr.rel (%p135) target = $region16
      $region15: #{tpu_custom_call.1} parent=5 // pred_region
        // Predicated region
        $region17: #{tpu_custom_call.1} parent=15 // pred_check
          %p138 = pneg %p35
        $region18: #{tpu_custom_call.1} parent=15 // pred_check_branch
          %140 = sbr.rel (%p138) target = $region20
        $region19: #{tpu_custom_call.1} parent=15 // pred_region
          %p141 = scmp.lt.s32.totalorder %s15, 2
          %s142 = scalar_select %p141, %s15, 2
          %s143 = smul.addr %s142, 8
          %s144 = scalar_lea.vmem %s0, %s143
        $region20: #{tpu_custom_call.1} parent=15 // pred_fallthru
          _
        // Predicated region
        $region21: #{tpu_custom_call.1} parent=15 // pred_check
          %p145 = pneg %p61
        $region22: #{tpu_custom_call.1} parent=15 // pred_check_branch
          %147 = sbr.rel (%p145) target = $region24
        $region23: #{tpu_custom_call.1} parent=15 // pred_region
          %s148 = sand.u32 %s51, 1
          %s149 = scalar_lea.sflag [#allocation3], %s148
          %s150 = sand.u32 %s51, 1
          %s151 = smul.addr %s150, 8
          %s152 = scalar_lea.vmem [#allocation2], %s151
          %s154 = ssub.s32 128, 128
          %155 = vsyncadd %s149, %s154
          %s156 = smul.addr %s15, 128
          %s157 = scalar_lea.hbm %s1, %s156
          %s159 = sshll.u32 %s152, 4
          %s160 = int_to_ptr.vmem [resolvable:$true] %s159
          %162 = dma.hbm_to_vmem [thread:$0]  %s157, 128, %s160, %s149
        $region24: #{tpu_custom_call.1} parent=15 // pred_fallthru
          _
        // Predicated region
        $region25: #{tpu_custom_call.1} parent=15 // pred_check
          %p163 = pneg %p87
        $region26: #{tpu_custom_call.1} parent=15 // pred_check_branch
          %165 = sbr.rel (%p163) target = $region28
        $region27: #{tpu_custom_call.1} parent=15 // pred_region
          %p166 = scmp.lt.s32.totalorder %s15, 2
          %s167 = scalar_select %p166, %s15, 2
          %s168 = smul.addr %s167, 8
          %s169 = scalar_lea.vmem %s2, %s168
        $region28: #{tpu_custom_call.1} parent=15 // pred_fallthru
          _
      $region16: #{tpu_custom_call.1} parent=5 // pred_fallthru
        _
      %p170 = scmp.le.s32.totalorder 1, %s15
      %p171 = scmp.lt.s32.totalorder %s15, 4
      %p172 = pnand %p170, %p171
      %p173 = pneg %p172
      // Predicated region
      $region29: #{tpu_custom_call.1} parent=5 // pred_check
        _
      $region30: #{tpu_custom_call.1} parent=5 // pred_check_branch
        %175 = sbr.rel (%p172) target = $region32
      $region31: #{tpu_custom_call.1} parent=5 // pred_region
        %s176 = ssub.s32 %s15, 1
        %s177 = sand.u32 %s54, 1
        %s178 = scalar_lea.sflag [#allocation3], %s177
        %s179 = sand.u32 %s54, 1
        %s180 = smul.addr %s179, 8
        %s181 = scalar_lea.vmem [#allocation2], %s180
        // Predicated region
        $region33: #{tpu_custom_call.1} parent=31 // pred_check
          %p182 = pneg %p67
        $region34: #{tpu_custom_call.1} parent=31 // pred_check_branch
          %184 = sbr.rel (%p182) target = $region36
        $region35: #{tpu_custom_call.1} parent=31 // pred_region
          %185 = dma.done %s178, 128
        $region36: #{tpu_custom_call.1} parent=31 // pred_fallthru
          _
        %p186 = scmp.lt.s32.totalorder %s20, 2
        %s187 = scalar_select %p186, %s20, 2
        %s188 = smul.addr %s187, 8
        %s189 = scalar_lea.vmem %s0, %s188
        %p190 = pneg %p41
        %p191 = pneg %p38
        %s192 = sand.u32 %s54, 1
        %s193 = scalar_lea.sflag [#allocation3], %s192
        %s194 = sand.u32 %s54, 1
        %s195 = smul.addr %s194, 8
        %s196 = scalar_lea.vmem [#allocation2], %s195
        %p197 = pneg %p67
        %p198 = pneg %p64
        %p199 = scmp.lt.s32.totalorder %s20, 2
        %s200 = scalar_select %p199, %s20, 2
        %s201 = smul.addr %s200, 8
        %s202 = scalar_lea.vmem %s2, %s201
        %p203 = pneg %p93
        %p204 = pneg %p90
        %p205 = pneg %p119
        %p206 = pneg %p116
        %s207 = sand.u32 %s106, 1
        %s208 = scalar_lea.sflag [#allocation4], %s207
        %s209 = sand.u32 %s106, 1
        %s210 = scalar_lea.vmem [#allocation5], %s209
        %p211 = scmp.lt.s32.totalorder %s20, 2
        %s212 = scalar_select %p211, %s20, 2
        %s213 = smul.addr %s212, 8
        %s214 = scalar_lea.vmem %s0, %s213
        %p215 = scmp.lt.s32.totalorder %s20, 2
        %s216 = scalar_select %p215, %s20, 2
        %s217 = smul.addr %s216, 8
        %s218 = scalar_lea.vmem %s2, %s217
        %v219 = vld [vmem:[%s214] sm:$0xff]
        %v220 = vld [vmem:[%s181] sm:$0xff]
        %v221 = vld [vmem:[%s218] sm:$0xff]
        %v222 = vsub.f32 %v219, %v220
        %v223 = vmul.f32 %v222, %v222
        %224 = vadd.xlane.f32.xlu0 %v223
        %v225 = vpop.xlane.xlu0 %224
        %v226 = vrsqrt.pop %v225
        %v227 = vmul.f32 %v225, %v226
        %vm228 = vcmp.eq.f32.partialorder %v225, inf
        %v229 = vsel %vm228, %v225, %v227
        %vm230 = vcmp.eq.f32.partialorder %v225, 0.0
        %v231 = vand.u32 %v225, 2147483648
        %v232 = vsel %vm230, %v231, %v229
        %233 = vrot.lane.b32.xlu0 %v221, 127
        %v234 = vpop.permute.xlu0 %233
        %vm235 = vcmp.eq.s32.totalorder %v221, %v234
        %v236 = vsel %vm235, 1, 0
        %v237 = vcvt.s32.f32 %v236
        %vm238 = vcmp.eq.s32.totalorder %v221, 1
        %v239 = vsel %vm238, 1, 0
        %240 = vrot.lane.b32.xlu0 %v239, 127
        %v241 = vpop.permute.xlu0 %240
        %vm242 = vcmp.ne.s32.totalorder %v241, 0
        %vm243 = vmand %vm238, %vm242
        %v244 = vsel %vm243, 1, 0
        %v245 = vcvt.s32.f32 %v244
        %v246 = vadd.f32 %v245, 1.0
        %v247 = vsub.f32 1.0, %v232
        %v248 = vmax.f32 %v247, 0.0
        %v249 = vmul.f32 %v237, %v225
        %v250 = vsub.f32 1.0, %v237
        %v251 = vmul.f32 %v250, %v248
        %v252 = vmul.f32 %v251, %v248
        %v253 = vadd.f32 %v249, %v252
        %v254 = vmul.f32 %v253, %v246
        %s255 = smul.u32 %s20, 8
        %v256 = vlaneseq
        %v257 = vshrl.u32 %v256, 7
        %v258 = vstv %s255
        %v259 = vadd.s32 %v258, %v257
        %vm260 = vcmp.lt.s32.totalorder %v259, 20
        %v261 = vsel %vm260, %v254, 0.0
        %vm262 = vcmask 7168
        %v263 = vsel %vm262, %v261, 0.0
        %264 = vadd.xlane.f32.xlu0 %v263
        %v265 = vpop.xlane.xlu0 %264
        %v266 = vrot.slane %v265, 4
        %v267 = vadd.f32 %v265, %v266
        %v268 = vrot.slane %v267, 2
        %v269 = vadd.f32 %v267, %v268
        %v270 = vrot.slane %v269, 1
        %v271 = vadd.f32 %v269, %v270
        %s272 = vtos %v271
        %v273 = vstv %s272
        %274 = vst [vmem:[%s210] sm:$0x1] %v273
        %s275 = sand.u32 %s106, 1
        %s276 = scalar_lea.sflag [#allocation4], %s275
        %s277 = sand.u32 %s106, 1
        %s278 = scalar_lea.vmem [#allocation5], %s277
        // Predicated region
        $region37: #{tpu_custom_call.1} parent=31 // pred_check
          %p279 = pneg %p116
        $region38: #{tpu_custom_call.1} parent=31 // pred_check_branch
          %281 = sbr.rel (%p279) target = $region40
        $region39: #{tpu_custom_call.1} parent=31 // pred_region
          %s283 = ssub.s32 16, 16
          %284 = vsyncadd %s276, %s283
          %s285 = smul.addr %s20, 16
          %s286 = scalar_lea.hbm %s3, %s285
          %s288 = sshll.u32 %s278, 4
          %s289 = int_to_ptr.vmem [resolvable:$true] %s288
          %291 = dma.vmem_to_hbm [thread:$0]  %s289, 16, %s286, %s276
        $region40: #{tpu_custom_call.1} parent=31 // pred_fallthru
          _
      $region32: #{tpu_custom_call.1} parent=5 // pred_fallthru
        _
      %p292 = scmp.le.s32.totalorder 2, %s15
      // Predicated region
      $region41: #{tpu_custom_call.1} parent=5 // pred_check
        %p293 = pneg %p292
      $region42: #{tpu_custom_call.1} parent=5 // pred_check_branch
        %295 = sbr.rel (%p293) target = $region44
      $region43: #{tpu_custom_call.1} parent=5 // pred_region
        %s296 = ssub.s32 %s15, 2
        // Predicated region
        $region45: #{tpu_custom_call.1} parent=43 // pred_check
          %p297 = pneg %p122
        $region46: #{tpu_custom_call.1} parent=43 // pred_check_branch
          %299 = sbr.rel (%p297) target = $region48
        $region47: #{tpu_custom_call.1} parent=43 // pred_region
          %s300 = sand.u32 %s107, 1
          %s301 = scalar_lea.sflag [#allocation4], %s300
          %s302 = sand.u32 %s107, 1
          %s303 = scalar_lea.vmem [#allocation5], %s302
          %304 = dma.done %s301, 16
        $region48: #{tpu_custom_call.1} parent=43 // pred_fallthru
          _
      $region44: #{tpu_custom_call.1} parent=5 // pred_fallthru
        _
    $region6: #{tpu_custom_call.1} parent=1 // loop_footer
      %s19 = sadd.s32 1, %s15
    $region7: #{tpu_custom_call.1} parent=1 // loop_footer_branch
      %14 = sbr.rel target = $region3
    $region8: #{tpu_custom_call.1} parent=1 // loop_exit
      _
    %305 = vsyncpa [#allocation3], 1
    %s306 = scalar_lea.sflag [#allocation3], 1
    %307 = vsyncpa %s306, 1
    %308 = vsyncpa [#allocation4], 1
    %s309 = scalar_lea.sflag [#allocation4], 1
    %310 = vsyncpa %s309, 1

</llo_original>
